<compile_context>
chip_gen: v7x
topology: tpu7x:2x2x1
jax: 0.10.0
libtpu: 0.0.40
codegen_flags: <defaults>
</compile_context>

<pallas_src>
import functools

import jax
import jax.numpy as jnp
from jax import lax
from jax.experimental import pallas as pl
from jax.experimental.pallas import tpu as pltpu

_SUBLANES = 8    # f32 sublanes per vreg: channel-chunk height for in-register accumulation
_LANES = 128     # lane width


def _dw_conv1d_body(x_ref, m_ref, w_ref, b_ref, o_ref, *, pad_l, k_taps, n_valid):
    """One (channel-tile, batch) grid step.

    x_ref : (CT, NP)  raw activations (original dtype), NP a multiple of 128
    m_ref : (1, NP)   0/1 time mask (f32), or None when no mask was supplied
    w_ref : (CT, K)   depthwise filters (one length-K filter per channel)
    b_ref : (CT, 1)   bias
    o_ref : (CT, NP)  output
    """
    ct, npad = o_ref.shape

    # Hoisted, chunk-invariant per-tap edge masks.  Tap k needs x[t + k - pad_l]; that is a
    # circular lane roll by s = pad_l - k plus zero-fill where t - s falls outside [0, n_valid).
    lane = lax.broadcasted_iota(jnp.int32, (1, npad), 1)
    edge = []
    for k in range(k_taps):
        s = pad_l - k
        if s > 0:
            edge.append(lane >= s)
        elif s < 0:
            edge.append(lane < (n_valid + s))
        else:
            edge.append(None)

    # Single mask compare, reused for the input and output masked_fill.
    tvalid = (m_ref[...] > 0.0) if m_ref is not None else None        # (1, NP) bool

    n_chunks = ct // _SUBLANES

    def chunk(ci, carry):
        c0 = pl.multiple_of(ci * _SUBLANES, _SUBLANES)
        xs = x_ref[pl.ds(c0, _SUBLANES), :].astype(jnp.float32)       # (8, NP), cast hoisted
        if tvalid is not None:
            xs = jnp.where(tvalid, xs, 0.0)                           # input masked_fill
        wc = w_ref[pl.ds(c0, _SUBLANES), :].astype(jnp.float32)       # (8, K)

        acc = None
        for k in range(k_taps):                                       # static unroll over taps
            s = pad_l - k
            r = xs if s == 0 else pltpu.roll(xs, shift=s % npad, axis=1)   # XLU lane roll
            if edge[k] is not None:
                r = jnp.where(edge[k], r, 0.0)                        # zero-fill sequence edges
            term = wc[:, k:k + 1] * r                                  # VPU madd, acc in vregs
            acc = term if acc is None else acc + term

        acc = acc + b_ref[pl.ds(c0, _SUBLANES), :].astype(jnp.float32)
        if tvalid is not None:
            acc = jnp.where(tvalid, acc, 0.0)                         # output masked_fill
        o_ref[pl.ds(c0, _SUBLANES), :] = acc.astype(o_ref.dtype)      # one lane-dense store
        return carry

    lax.fori_loop(0, n_chunks, chunk, 0)


def _dw_kernel_masked(x_ref, m_ref, w_ref, b_ref, o_ref, *, pad_l, k_taps, n_valid):
    _dw_conv1d_body(x_ref, m_ref, w_ref, b_ref, o_ref,
                    pad_l=pad_l, k_taps=k_taps, n_valid=n_valid)


def _dw_kernel_nomask(x_ref, w_ref, b_ref, o_ref, *, pad_l, k_taps, n_valid):
    _dw_conv1d_body(x_ref, None, w_ref, b_ref, o_ref,
                    pad_l=pad_l, k_taps=k_taps, n_valid=n_valid)


def _generation_budgets():
    """(per-block x byte target, vmem_limit_bytes), tuned per TPU generation."""
    try:
        cap = getattr(pltpu.get_tpu_info(), "vmem_capacity_bytes", None)
    except Exception:
        cap = None
    if cap is None:
        return 2 << 20, 32 << 20                    # unknown backend: conservative defaults
    if cap <= 80 * 1024 * 1024:                     # v7x-class: 64 MiB/TC, ~3.2 TB/s HBM
        return 4 << 20, 44 << 20
    return 6 << 20, 64 << 20                        # v5e/v6e-class: 128 MiB physical VMEM


def _pick_channel_tile(c_padded, npad, itemsize, target_bytes, sub, min_tiles=1):
    """Largest multiple-of-`sub` divisor of c_padded whose (ct, npad) input block fits the
    byte target, preferring >= min_tiles channel tiles (v7x megacore balance)."""
    cands = [ct for ct in range(sub, c_padded + 1, sub)
             if c_padded % ct == 0 and ct * npad * itemsize <= target_bytes]
    if not cands:
        return sub
    pref = [ct for ct in cands if c_padded // ct >= min_tiles]
    return max(pref) if pref else max(cands)


def depthwise_conv1d(x, weight, bias, padding, mask=None):
    """Forward pass matching DepthWiseConv1d.forward.

    x      : (B, C, N) activations (NCW, same as torch.nn.Conv1d)
    weight : (C, 1, K)  depthwise conv weight (chan_out == chan_in, groups == C)
    bias   : (C,)
    padding: (pad_left, pad_right) applied to the time axis (F.pad semantics)
    mask   : optional (B, N) bool
    """
    B, C, N = x.shape
    K = weight.shape[-1]
    pad_l, pad_r = padding
    assert pad_l >= 0 and pad_r >= 0
    assert pad_l + pad_r == K - 1, "conformer padding keeps the sequence length unchanged"

    itemsize = x.dtype.itemsize
    sub = {4: _SUBLANES, 2: 2 * _SUBLANES, 1: 4 * _SUBLANES}.get(itemsize, _SUBLANES)

    # Channel padding to the sublane granule (channel tiling always legal) and time padding to
    # a 128-lane multiple (lane-dense stores).  Time padding costs one HBM copy of x plus one
    # output slice, so it only happens when N % 128 != 0; prefer 128-multiple sequence lengths.
    Cp = -(-C // sub) * sub
    Np = -(-N // _LANES) * _LANES

    xk = x
    if Cp != C or Np != N:
        xk = jnp.pad(x, ((0, 0), (0, Cp - C), (0, Np - N)))

    w2d = weight.reshape(C, K).astype(jnp.float32)
    b2d = bias.reshape(C, 1).astype(jnp.float32)
    if Cp != C:
        w2d = jnp.pad(w2d, ((0, Cp - C), (0, 0)))
        b2d = jnp.pad(b2d, ((0, Cp - C), (0, 0)))

    target_bytes, vmem_limit = _generation_budgets()
    min_tiles = 2 if B == 1 else 1          # keep both v7x TensorCores busy at batch 1
    ct = _pick_channel_tile(Cp, Np, itemsize, target_bytes, sub, min_tiles)
    nc = Cp // ct

    x_spec = pl.BlockSpec((None, ct, Np), lambda c, b: (b, c, 0))
    o_spec = pl.BlockSpec((None, ct, Np), lambda c, b: (b, c, 0))
    w_spec = pl.BlockSpec((ct, K), lambda c, b: (c, 0))   # outer-axis only -> stays VMEM resident
    b_spec = pl.BlockSpec((ct, 1), lambda c, b: (c, 0))

    statics = dict(pad_l=pad_l, k_taps=K, n_valid=N)
    if mask is not None:
        m = mask[:, None, :].astype(jnp.float32)          # (B, 1, N): tiny vs. (B, C, N)
        if Np != N:
            m = jnp.pad(m, ((0, 0), (0, 0), (0, Np - N)))
        kernel = functools.partial(_dw_kernel_masked, **statics)
        in_specs = [x_spec,
                    pl.BlockSpec((None, 1, Np), lambda c, b: (b, 0, 0)),
                    w_spec, b_spec]
        args = (xk, m, w2d, b2d)
    else:
        kernel = functools.partial(_dw_kernel_nomask, **statics)
        in_specs = [x_spec, w_spec, b_spec]
        args = (xk, w2d, b2d)

    out = pl.pallas_call(
        kernel,
        out_shape=jax.ShapeDtypeStruct((B, Cp, Np), x.dtype),
        grid_spec=pltpu.PrefetchScalarGridSpec(
            num_scalar_prefetch=0,
            grid=(nc, B),                 # batch innermost: filters/bias blocks stay resident
            in_specs=in_specs,
            out_specs=o_spec,
        ),
        compiler_params=pltpu.CompilerParams(
            dimension_semantics=("parallel", "parallel"),
            vmem_limit_bytes=vmem_limit,
        ),
    )(*args)

    if Cp != C or Np != N:
        out = out[:, :C, :N]
    return out


def _reference(x, weight, bias, padding, mask=None):
    """Pure-JAX reference mirroring the PyTorch forward."""
    if mask is not None:
        x = jnp.where(mask[:, None, :], x, 0.0)
    x_pad = jnp.pad(x, ((0, 0), (0, 0), (padding[0], padding[1])))
    out = lax.conv_general_dilated(
        x_pad, weight,
        window_strides=(1,), padding="VALID",
        dimension_numbers=("NCH", "OIH", "NCH"),
        feature_group_count=x.shape[1],
    ) + bias[None, :, None]
    if mask is not None:
        out = jnp.where(mask[:, None, :], out, 0.0)
    return out


if __name__ == "__main__":
    key = jax.random.PRNGKey(0)

    # Case 1 exercises: time padding (48 -> 128), 2 channel chunks in the fori_loop, B=2.
    # Case 2 exercises: channel padding (12 -> 16), N already 128-aligned, B=1 (forced >=2
    # channel tiles for megacore balance), K=5 with negative roll shifts.
    for (B, C, N, K) in [(2, 16, 48, 3), (1, 12, 128, 5)]:
        key, kx, kw, kb, km = jax.random.split(key, 5)
        x = jax.random.normal(kx, (B, C, N), dtype=jnp.float32)
        # nn.Conv1d(chan_in, chan_out=chan_in, K, groups=chan_in): weight (C, 1, K), bias (C,)
        bound = 1.0 / (1 * K) ** 0.5
        weight = jax.random.uniform(kw, (C, 1, K), minval=-bound, maxval=bound, dtype=jnp.float32)
        bias = jax.random.uniform(kb, (C,), minval=-bound, maxval=bound, dtype=jnp.float32)
        mask = jax.random.uniform(km, (B, N)) > 0.3   # (B, N) bool mask

        # causal padding (K-1, 0) and "same" padding, with and without a mask
        for padding in [(K - 1, 0), (K // 2, (K - 1) - K // 2)]:
            for mm in (mask, None):
                out = jax.block_until_ready(depthwise_conv1d(x, weight, bias, padding, mm))
                ref = _reference(x, weight, bias, padding, mm)
                assert out.shape == (B, C, N)
                assert jnp.allclose(out, ref, atol=1e-5, rtol=1e-5), (
                    f"Pallas kernel mismatch vs reference: shape={(B, C, N, K)} "
                    f"padding={padding} mask={mm is not None}")

    print("KERNEL_OK")
</pallas_src>

<mosaic_0001>
module attributes {stable_mosaic.version = 11 : i64} {
  func.func @_dw_kernel_masked(%arg0: i32, %arg1: i32, %arg2: memref<1x16x128xf32, #tpu.memory_space<vmem>>, %arg3: memref<1x1x128xf32, #tpu.memory_space<vmem>>, %arg4: memref<16x3xf32, #tpu.memory_space<vmem>>, %arg5: memref<16x1xf32, #tpu.memory_space<vmem>>, %arg6: memref<1x16x128xf32, #tpu.memory_space<vmem>>) attributes {dimension_semantics = [#tpu.dimension_semantics<parallel>, #tpu.dimension_semantics<parallel>], iteration_bounds = array<i64: 1, 2>, scalar_prefetch = 0 : i64, scratch_operands = 0 : i64, tpu.core_type = #tpu.core_type<tc>, window_params = [{transform_indices = @transform_0, window_bounds = array<i64: 1, 16, 128>}, {transform_indices = @transform_1, window_bounds = array<i64: 1, 1, 128>}, {transform_indices = @transform_2, window_bounds = array<i64: 16, 3>}, {transform_indices = @transform_3, window_bounds = array<i64: 16, 1>}, {transform_indices = @transform_4, window_bounds = array<i64: 1, 16, 128>}]} {
    %0 = tpu.iota {dimensions = array<i32: 1>} : vector<1x128xi32>
    %c2_i32 = arith.constant 2 : i32
    %1 = vector.broadcast %c2_i32 : i32 to vector<1x128xi32>
    %2 = arith.cmpi sge, %0, %1 : vector<1x128xi32>
    %c1_i32 = arith.constant 1 : i32
    %3 = vector.broadcast %c1_i32 : i32 to vector<1x128xi32>
    %4 = arith.cmpi sge, %0, %3 : vector<1x128xi32>
    %c0 = arith.constant 0 : index
    %c0_0 = arith.constant 0 : index
    %c0_1 = arith.constant 0 : index
    %5 = vector.load %arg3[%c0, %c0_0, %c0_1] : memref<1x1x128xf32, #tpu.memory_space<vmem>>, vector<1x1x128xf32>
    %6 = vector.shape_cast %5 : vector<1x1x128xf32> to vector<1x128xf32>
    %cst = arith.constant 0.000000e+00 : f32
    %7 = vector.broadcast %cst : f32 to vector<1x128xf32>
    %8 = arith.cmpf ogt, %6, %7 : vector<1x128xf32>
    %c0_i32 = arith.constant 0 : i32
    %c2_i32_2 = arith.constant 2 : i32
    %9 = arith.addi %c0_i32, %c2_i32_2 : i32
    %c1_i32_3 = arith.constant 1 : i32
    scf.for %arg7 = %c0_i32 to %9 step %c1_i32_3  : i32 {
      %c8_i32 = arith.constant 8 : i32
      %10 = arith.muli %arg7, %c8_i32 : i32
      %11 = tpu.assume_multiple %10, 8 : i32
      %c0_5 = arith.constant 0 : index
      %12 = arith.index_cast %11 : i32 to index
      %c0_6 = arith.constant 0 : index
      %13 = vector.load %arg2[%c0_5, %12, %c0_6] : memref<1x16x128xf32, #tpu.memory_space<vmem>>, vector<1x8x128xf32>
      %14 = vector.shape_cast %13 : vector<1x8x128xf32> to vector<8x128xf32>
      %cst_7 = arith.constant 0.000000e+00 : f32
      %15 = vector.shape_cast %8 : vector<1x128xi1> to vector<1x128xi1>
      %16 = vector.broadcast %15 : vector<1x128xi1> to vector<8x128xi1>
      %17 = vector.broadcast %cst_7 : f32 to vector<8x128xf32>
      %18 = arith.select %16, %14, %17 : vector<8x128xi1>, vector<8x128xf32>
      %19 = arith.index_cast %11 : i32 to index
      %c0_8 = arith.constant 0 : index
      %20 = vector.load %arg4[%19, %c0_8] : memref<16x3xf32, #tpu.memory_space<vmem>>, vector<8x3xf32>
      %c2_i32_9 = arith.constant 2 : i32
      %21 = tpu.dynamic_rotate %18 by %c2_i32_9 dim 1 : vector<8x128xf32>, i32 -> vector<8x128xf32>
      %cst_10 = arith.constant 0.000000e+00 : f32
      %22 = vector.shape_cast %2 : vector<1x128xi1> to vector<1x128xi1>
      %23 = vector.broadcast %22 : vector<1x128xi1> to vector<8x128xi1>
      %24 = vector.broadcast %cst_10 : f32 to vector<8x128xf32>
      %25 = arith.select %23, %21, %24 : vector<8x128xi1>, vector<8x128xf32>
      %26 = vector.extract_strided_slice %20 {offsets = [0, 0], sizes = [8, 1], strides = [1, 1]} : vector<8x3xf32> to vector<8x1xf32>
      %27 = vector.broadcast %26 : vector<8x1xf32> to vector<8x128xf32>
      %28 = arith.mulf %27, %25 : vector<8x128xf32>
      %c1_i32_11 = arith.constant 1 : i32
      %29 = tpu.dynamic_rotate %18 by %c1_i32_11 dim 1 : vector<8x128xf32>, i32 -> vector<8x128xf32>
      %cst_12 = arith.constant 0.000000e+00 : f32
      %30 = vector.shape_cast %4 : vector<1x128xi1> to vector<1x128xi1>
      %31 = vector.broadcast %30 : vector<1x128xi1> to vector<8x128xi1>
      %32 = vector.broadcast %cst_12 : f32 to vector<8x128xf32>
      %33 = arith.select %31, %29, %32 : vector<8x128xi1>, vector<8x128xf32>
      %34 = vector.extract_strided_slice %20 {offsets = [0, 1], sizes = [8, 1], strides = [1, 1]} : vector<8x3xf32> to vector<8x1xf32>
      %35 = vector.broadcast %34 : vector<8x1xf32> to vector<8x128xf32>
      %36 = arith.mulf %35, %33 : vector<8x128xf32>
      %37 = arith.addf %28, %36 : vector<8x128xf32>
      %38 = vector.extract_strided_slice %20 {offsets = [0, 2], sizes = [8, 1], strides = [1, 1]} : vector<8x3xf32> to vector<8x1xf32>
      %39 = vector.broadcast %38 : vector<8x1xf32> to vector<8x128xf32>
      %40 = arith.mulf %39, %18 : vector<8x128xf32>
      %41 = arith.addf %37, %40 : vector<8x128xf32>
      %42 = arith.index_cast %11 : i32 to index
      %c0_13 = arith.constant 0 : index
      %43 = vector.load %arg5[%42, %c0_13] : memref<16x1xf32, #tpu.memory_space<vmem>>, vector<8x1xf32>
      %44 = vector.broadcast %43 : vector<8x1xf32> to vector<8x128xf32>
      %45 = arith.addf %41, %44 : vector<8x128xf32>
      %cst_14 = arith.constant 0.000000e+00 : f32
      %46 = vector.shape_cast %8 : vector<1x128xi1> to vector<1x128xi1>
      %47 = vector.broadcast %46 : vector<1x128xi1> to vector<8x128xi1>
      %48 = vector.broadcast %cst_14 : f32 to vector<8x128xf32>
      %49 = arith.select %47, %45, %48 : vector<8x128xi1>, vector<8x128xf32>
      %c0_15 = arith.constant 0 : index
      %50 = arith.index_cast %11 : i32 to index
      %c0_16 = arith.constant 0 : index
      %51 = vector.load %arg6[%c0_15, %50, %c0_16] : memref<1x16x128xf32, #tpu.memory_space<vmem>>, vector<1x8x128xf32>
      %52 = vector.shape_cast %51 : vector<1x8x128xf32> to vector<8x128xf32>
      %53 = vector.shape_cast %49 : vector<8x128xf32> to vector<1x8x128xf32>
      tpu.vector_store %arg6[%c0_15, %50, %c0_16], %53 {strides = array<i32>} : memref<1x16x128xf32, #tpu.memory_space<vmem>>, vector<1x8x128xf32>,
    }
    %c2_i32_4 = arith.constant 2 : i32
    return
  }
  func.func @transform_0(%arg0: i32, %arg1: i32) -> (i32, i32, i32) {
    %c0_i32 = arith.constant 0 : i32
    %c0_i32_0 = arith.constant 0 : i32
    return %arg1, %arg0, %c0_i32 : i32, i32, i32
  }
  func.func @transform_1(%arg0: i32, %arg1: i32) -> (i32, i32, i32) {
    %c0_i32 = arith.constant 0 : i32
    %c0_i32_0 = arith.constant 0 : i32
    %c0_i32_1 = arith.constant 0 : i32
    return %arg1, %c0_i32, %c0_i32_0 : i32, i32, i32
  }
  func.func @transform_2(%arg0: i32, %arg1: i32) -> (i32, i32) {
    %c0_i32 = arith.constant 0 : i32
    %c0_i32_0 = arith.constant 0 : i32
    return %arg0, %c0_i32 : i32, i32
  }
  func.func @transform_3(%arg0: i32, %arg1: i32) -> (i32, i32) {
    %c0_i32 = arith.constant 0 : i32
    %c0_i32_0 = arith.constant 0 : i32
    return %arg0, %c0_i32 : i32, i32
  }
  func.func @transform_4(%arg0: i32, %arg1: i32) -> (i32, i32, i32) {
    %c0_i32 = arith.constant 0 : i32
    %c0_i32_0 = arith.constant 0 : i32
    return %arg1, %arg0, %c0_i32 : i32, i32, i32
  }
}

</mosaic_0001>

<llo_original>
// kernel: tpu_custom_call.1
$region0: #{tpu_custom_call.1}
  #allocation0 [shape = 'u32[]', space=smem, size = 0x4, offset = 0x4, fixed_abs, tag = 'smem constant byte address 0x4 - core index']
  #allocation1 [shape = 'u32[144,128]{1,0:T(1,128)}', space=vmem, size = 0x12000, scoped, tag = 'internal scratch']
  %s0 = inlined_call_operand.vmem [shape: f32[2,16,128], index: 0, kind: input, shape index: {}]
  %s1 = inlined_call_operand.vmem [shape: f32[2,1,128], index: 1, kind: input, shape index: {}]
  %s2 = inlined_call_operand.vmem [shape: f32[16,3], index: 2, kind: input, shape index: {}]
  %s3 = inlined_call_operand.vmem [shape: f32[16,1], index: 3, kind: input, shape index: {}]
  %s4 = inlined_call_operand.hbm [shape: f32[2,16,128], index: 4, kind: output, shape index: {}]
  %s5 = sld [smem:[#allocation0]]
  $region56: #{tpu_custom_call.1} parent=0
    _
  %s7 = ssub.s32 1, %s5
  %s8 = scalar_select 0, %s7, %s5
  $region1: #{tpu_custom_call.1} parent=0
    #allocation2 [shape = 'u8[16384]{0}', space=vmem, size = 0x4000, scoped, tag = 'output window, operand 0']
    #allocation3 [shape = 's32[2]{0}', space=sflag, size = 0x8, scoped, tag = 'scoped memory for tpu_custom_call.1']
    %9 = vsyncpa [#allocation3], 0
    %s10 = scalar_lea.sflag [#allocation3], 1
    %11 = vsyncpa %s10, 0
    loop: start=0, step=1, limit=4
    $region2: #{tpu_custom_call.1} parent=1 // loop_pre_header
      _
    $region3: #{tpu_custom_call.1} parent=1 // loop_header
      %s13 = sphi 0, %s17
      %p14 = scmp.ge.s32.totalorder %s13, 4
      %s20 = sphi 0, %s32
      %s21 = sphi 0, %s28
      %s22 = sphi 0, %s20
      %s23 = sphi 0, %s21
      %s24 = sphi 0, %s22
      %s25 = sphi 0, %s23
      %s37 = sphi 0, %s39
      %s40 = sphi 0, %s37
      %s41 = sphi 0, %s40
      %s57 = sphi 0, %s41
      %s63 = sphi 0, %s65
      %s66 = sphi 0, %s63
      %s67 = sphi 0, %s66
      %s83 = sphi 0, %s67
      %s89 = sphi 0, %s91
      %s92 = sphi 0, %s89
      %s93 = sphi 0, %s92
      %s109 = sphi 0, %s93
      %s115 = sphi 0, %s117
      %s118 = sphi 0, %s115
      %s119 = sphi 0, %s118
      %s135 = sphi 0, %s119
      %s143 = sphi 0, %s145
      %s146 = sphi 0, %s143
      %s147 = sphi 0, %s146
      %s163 = sphi 0, %s147
    $region4: #{tpu_custom_call.1} parent=1 // loop_header_branch
      %16 = sbr.rel (%p14) target = $region8
    $region5: #{tpu_custom_call.1} parent=1 // loop_body
      %s18 = ssub.s32 %s13, 1
      %s19 = ssub.s32 %s13, 2
      %s26 = sadd.s32 1, %s21
      %p27 = scmp.ge.s32.totalorder %s26, 2
      %s28 = scalar_select %p27, 0, %s26
      %s29 = sadd.s32 1, %s20
      %s30 = scalar_select %p27, %s29, %s20
      %p31 = scmp.ge.s32.totalorder %s30, 1
      %s32 = scalar_select %p31, 0, %s30
      %s33 = ssub.s32 %s21, %s28
      %s34 = ssub.s32 %s20, %s32
      %s35 = sor.u32 %s33, %s34
      %p36 = scmp.eq.s32.totalorder %s35, 0
      %s38 = sadd.s32 %s37, 1
      %s39 = scalar_select %p36, %s37, %s38
      %p42 = pneg %p36
      %p43 = scmp.eq.s32.totalorder %s13, 1
      %p44 = por %p42, %p43
      %p45 = scmp.ne.s32.totalorder %s37, %s40
      %p46 = scmp.eq.s32.totalorder %s13, 0
      %p47 = por %p45, %p46
      %p48 = scmp.ne.s32.totalorder %s37, %s40
      %p49 = scmp.eq.s32.totalorder %s18, 1
      %p50 = por %p48, %p49
      %p51 = scmp.ne.s32.totalorder %s40, %s41
      %p52 = scmp.eq.s32.totalorder %s18, 0
      %p53 = por %p51, %p52
      %p54 = scmp.ne.s32.totalorder %s40, %s41
      %p55 = scmp.eq.s32.totalorder %s19, 1
      %p56 = por %p54, %p55
      %p58 = scmp.ne.s32.totalorder %s41, %s57
      %p59 = scmp.eq.s32.totalorder %s19, 0
      %p60 = por %p58, %p59
      %s61 = ssub.s32 %s21, %s28
      %p62 = scmp.eq.s32.totalorder %s61, 0
      %s64 = sadd.s32 %s63, 1
      %s65 = scalar_select %p62, %s63, %s64
      %p68 = pneg %p62
      %p69 = scmp.eq.s32.totalorder %s13, 1
      %p70 = por %p68, %p69
      %p71 = scmp.ne.s32.totalorder %s63, %s66
      %p72 = scmp.eq.s32.totalorder %s13, 0
      %p73 = por %p71, %p72
      %p74 = scmp.ne.s32.totalorder %s63, %s66
      %p75 = scmp.eq.s32.totalorder %s18, 1
      %p76 = por %p74, %p75
      %p77 = scmp.ne.s32.totalorder %s66, %s67
      %p78 = scmp.eq.s32.totalorder %s18, 0
      %p79 = por %p77, %p78
      %p80 = scmp.ne.s32.totalorder %s66, %s67
      %p81 = scmp.eq.s32.totalorder %s19, 1
      %p82 = por %p80, %p81
      %p84 = scmp.ne.s32.totalorder %s67, %s83
      %p85 = scmp.eq.s32.totalorder %s19, 0
      %p86 = por %p84, %p85
      %s87 = ssub.s32 %s20, %s32
      %p88 = scmp.eq.s32.totalorder %s87, 0
      %s90 = sadd.s32 %s89, 1
      %s91 = scalar_select %p88, %s89, %s90
      %p94 = pneg %p88
      %p95 = scmp.eq.s32.totalorder %s13, 1
      %p96 = por %p94, %p95
      %p97 = scmp.ne.s32.totalorder %s89, %s92
      %p98 = scmp.eq.s32.totalorder %s13, 0
      %p99 = por %p97, %p98
      %p100 = scmp.ne.s32.totalorder %s89, %s92
      %p101 = scmp.eq.s32.totalorder %s18, 1
      %p102 = por %p100, %p101
      %p103 = scmp.ne.s32.totalorder %s92, %s93
      %p104 = scmp.eq.s32.totalorder %s18, 0
      %p105 = por %p103, %p104
      %p106 = scmp.ne.s32.totalorder %s92, %s93
      %p107 = scmp.eq.s32.totalorder %s19, 1
      %p108 = por %p106, %p107
      %p110 = scmp.ne.s32.totalorder %s93, %s109
      %p111 = scmp.eq.s32.totalorder %s19, 0
      %p112 = por %p110, %p111
      %s113 = ssub.s32 %s20, %s32
      %p114 = scmp.eq.s32.totalorder %s113, 0
      %s116 = sadd.s32 %s115, 1
      %s117 = scalar_select %p114, %s115, %s116
      %p120 = pneg %p114
      %p121 = scmp.eq.s32.totalorder %s13, 1
      %p122 = por %p120, %p121
      %p123 = scmp.ne.s32.totalorder %s115, %s118
      %p124 = scmp.eq.s32.totalorder %s13, 0
      %p125 = por %p123, %p124
      %p126 = scmp.ne.s32.totalorder %s115, %s118
      %p127 = scmp.eq.s32.totalorder %s18, 1
      %p128 = por %p126, %p127
      %p129 = scmp.ne.s32.totalorder %s118, %s119
      %p130 = scmp.eq.s32.totalorder %s18, 0
      %p131 = por %p129, %p130
      %p132 = scmp.ne.s32.totalorder %s118, %s119
      %p133 = scmp.eq.s32.totalorder %s19, 1
      %p134 = por %p132, %p133
      %p136 = scmp.ne.s32.totalorder %s119, %s135
      %p137 = scmp.eq.s32.totalorder %s19, 0
      %p138 = por %p136, %p137
      %s139 = ssub.s32 %s21, %s28
      %s140 = ssub.s32 %s20, %s32
      %s141 = sor.u32 %s139, %s140
      %p142 = scmp.eq.s32.totalorder %s141, 0
      %s144 = sadd.s32 %s143, 1
      %s145 = scalar_select %p142, %s143, %s144
      %p148 = pneg %p142
      %p149 = scmp.eq.s32.totalorder %s13, 1
      %p150 = por %p148, %p149
      %p151 = scmp.ne.s32.totalorder %s143, %s146
      %p152 = scmp.eq.s32.totalorder %s13, 0
      %p153 = por %p151, %p152
      %p154 = scmp.ne.s32.totalorder %s143, %s146
      %p155 = scmp.eq.s32.totalorder %s18, 1
      %p156 = por %p154, %p155
      %p157 = scmp.ne.s32.totalorder %s146, %s147
      %p158 = scmp.eq.s32.totalorder %s18, 0
      %p159 = por %p157, %p158
      %p160 = scmp.ne.s32.totalorder %s146, %s147
      %p161 = scmp.eq.s32.totalorder %s19, 1
      %p162 = por %p160, %p161
      %p164 = scmp.ne.s32.totalorder %s147, %s163
      %p165 = scmp.eq.s32.totalorder %s19, 0
      %p166 = por %p164, %p165
      %p167 = scmp.le.s32.totalorder 1, %s13
      %p168 = scmp.lt.s32.totalorder %s13, 3
      %p169 = pnand %p167, %p168
      %p170 = pneg %p169
      // Predicated region
      $region9: #{tpu_custom_call.1} parent=5 // pred_check
        _
      $region10: #{tpu_custom_call.1} parent=5 // pred_check_branch
        %172 = sbr.rel (%p169) target = $region12
      $region11: #{tpu_custom_call.1} parent=5 // pred_region
        %s173 = ssub.s32 %s13, 1
        // Predicated region
        $region13: #{tpu_custom_call.1} parent=11 // pred_check
          %p174 = pneg %p105
        $region14: #{tpu_custom_call.1} parent=11 // pred_check_branch
          %176 = sbr.rel (%p174) target = $region16
        $region15: #{tpu_custom_call.1} parent=11 // pred_region
          %s177 = smul.u32 2, %s22
          %p178 = scmp.lt.s32.totalorder %s177, 1
          %s179 = scalar_select %p178, %s177, 1
          %s180 = smul.addr %s179, 8
          %s181 = scalar_lea.vmem %s2, %s180
          %s182 = smul.u32 2, %s22
        $region16: #{tpu_custom_call.1} parent=11 // pred_fallthru
          _
        // Predicated region
        $region17: #{tpu_custom_call.1} parent=11 // pred_check
          %p183 = pneg %p131
        $region18: #{tpu_custom_call.1} parent=11 // pred_check_branch
          %185 = sbr.rel (%p183) target = $region20
        $region19: #{tpu_custom_call.1} parent=11 // pred_region
          %s186 = smul.u32 2, %s22
          %p187 = scmp.lt.s32.totalorder %s186, 1
          %s188 = scalar_select %p187, %s186, 1
          %s189 = smul.addr %s188, 8
          %s190 = scalar_lea.vmem %s3, %s189
          %s191 = smul.u32 2, %s22
        $region20: #{tpu_custom_call.1} parent=11 // pred_fallthru
          _
      $region12: #{tpu_custom_call.1} parent=5 // pred_fallthru
        _
      %p192 = scmp.lt.s32.totalorder %s13, 2
      // Predicated region
      $region21: #{tpu_custom_call.1} parent=5 // pred_check
        %p193 = pneg %p192
      $region22: #{tpu_custom_call.1} parent=5 // pred_check_branch
        %195 = sbr.rel (%p193) target = $region24
      $region23: #{tpu_custom_call.1} parent=5 // pred_region
        // Predicated region
        $region25: #{tpu_custom_call.1} parent=23 // pred_check
          %p196 = pneg %p47
        $region26: #{tpu_custom_call.1} parent=23 // pred_check_branch
          %198 = sbr.rel (%p196) target = $region28
        $region27: #{tpu_custom_call.1} parent=23 // pred_region
          %s199 = smul.u32 2, %s20
          %p200 = scmp.lt.s32.totalorder %s21, 1
          %s201 = scalar_select %p200, %s21, 1
          %p202 = scmp.lt.s32.totalorder %s199, 1
          %s203 = scalar_select %p202, %s199, 1
          %s204 = smul.addr %s201, 2
          %s205 = sadd.s32 %s203, %s204
          %s206 = smul.addr %s205, 8
          %s207 = scalar_lea.vmem %s0, %s206
          %s208 = smul.u32 2, %s20
        $region28: #{tpu_custom_call.1} parent=23 // pred_fallthru
          _
        // Predicated region
        $region29: #{tpu_custom_call.1} parent=23 // pred_check
          %p209 = pneg %p73
        $region30: #{tpu_custom_call.1} parent=23 // pred_check_branch
          %211 = sbr.rel (%p209) target = $region32
        $region31: #{tpu_custom_call.1} parent=23 // pred_region
          %p212 = scmp.lt.s32.totalorder %s21, 1
          %s213 = scalar_select %p212, %s21, 1
          %s214 = scalar_lea.vmem %s1, %s213
        $region32: #{tpu_custom_call.1} parent=23 // pred_fallthru
          _
      $region24: #{tpu_custom_call.1} parent=5 // pred_fallthru
        _
      %p215 = scmp.le.s32.totalorder 1, %s13
      %p216 = scmp.lt.s32.totalorder %s13, 3
      %p217 = pnand %p215, %p216
      %p218 = pneg %p217
      // Predicated region
      $region33: #{tpu_custom_call.1} parent=5 // pred_check
        _
      $region34: #{tpu_custom_call.1} parent=5 // pred_check_branch
        %220 = sbr.rel (%p217) target = $region36
      $region35: #{tpu_custom_call.1} parent=5 // pred_region
        %s221 = ssub.s32 %s13, 1
        %s222 = smul.u32 2, %s22
        %p223 = scmp.lt.s32.totalorder %s23, 1
        %s224 = scalar_select %p223, %s23, 1
        %p225 = scmp.lt.s32.totalorder %s222, 1
        %s226 = scalar_select %p225, %s222, 1
        %s227 = smul.addr %s224, 2
        %s228 = sadd.s32 %s226, %s227
        %s229 = smul.addr %s228, 8
        %s230 = scalar_lea.vmem %s0, %s229
        %p231 = pneg %p53
        %p232 = pneg %p50
        %p233 = scmp.lt.s32.totalorder %s23, 1
        %s234 = scalar_select %p233, %s23, 1
        %s235 = scalar_lea.vmem %s1, %s234
        %p236 = pneg %p79
        %p237 = pneg %p76
        %s238 = smul.u32 2, %s22
        %p239 = scmp.lt.s32.totalorder %s238, 1
        %s240 = scalar_select %p239, %s238, 1
        %s241 = smul.addr %s240, 8
        %s242 = scalar_lea.vmem %s2, %s241
        %p243 = pneg %p105
        %p244 = pneg %p102
        %s245 = smul.u32 2, %s22
        %p246 = scmp.lt.s32.totalorder %s245, 1
        %s247 = scalar_select %p246, %s245, 1
        %s248 = smul.addr %s247, 8
        %s249 = scalar_lea.vmem %s3, %s248
        %p250 = pneg %p131
        %p251 = pneg %p128
        %p252 = pneg %p159
        %p253 = pneg %p156
        %s254 = sand.u32 %s146, 1
        %s255 = scalar_lea.sflag [#allocation3], %s254
        %s256 = sand.u32 %s146, 1
        %s257 = smul.addr %s256, 16
        %s258 = scalar_lea.vmem [#allocation2], %s257
        %s259 = smul.u32 2, %s22
        %p260 = scmp.lt.s32.totalorder %s23, 1
        %s261 = scalar_select %p260, %s23, 1
        %p262 = scmp.lt.s32.totalorder %s259, 1
        %s263 = scalar_select %p262, %s259, 1
        %s264 = smul.addr %s261, 2
        %s265 = sadd.s32 %s263, %s264
        %s266 = smul.addr %s265, 8
        %s267 = scalar_lea.vmem %s0, %s266
        %s268 = smul.u32 2, %s22
        %p269 = scmp.lt.s32.totalorder %s23, 1
        %s270 = scalar_select %p269, %s23, 1
        %s271 = scalar_lea.vmem %s1, %s270
        %s272 = smul.u32 2, %s22
        %p273 = scmp.lt.s32.totalorder %s272, 1
        %s274 = scalar_select %p273, %s272, 1
        %s275 = smul.addr %s274, 8
        %s276 = scalar_lea.vmem %s2, %s275
        %s277 = smul.u32 2, %s22
        %s278 = smul.u32 2, %s22
        %p279 = scmp.lt.s32.totalorder %s278, 1
        %s280 = scalar_select %p279, %s278, 1
        %s281 = smul.addr %s280, 8
        %s282 = scalar_lea.vmem %s3, %s281
        %s283 = smul.u32 2, %s22
        %s284 = smul.u32 2, %s22
        %v285 = vlaneseq
        %v286 = vand.u32 %v285, 127
        %vm287 = vcmp.ge.s32.totalorder %v286, 2
        %vm288 = vcmp.ge.s32.totalorder %v286, 1
        %v289 = vld [vmem:[%s271] sm:$0x1]
        %vm290 = vcmp.gt.f32.partialorder %v289, 0.0
        loop: start=0, step=1, limit=2
        $region37: #{tpu_custom_call.1} parent=35 // loop_pre_header
          _
        $region38: #{tpu_custom_call.1} parent=35 // loop_header
          %s292 = sphi 0, %s296
          %p293 = scmp.ge.s32.totalorder %s292, 2
        $region39: #{tpu_custom_call.1} parent=35 // loop_header_branch
          %295 = sbr.rel (%p293) target = $region43
        $region40: #{tpu_custom_call.1} parent=35 // loop_body
          %s297 = smul.u32 %s292, 8
          %s298 = scalar_lea.vmem %s267, %s297
          %v299 = vld [vmem:[%s298] sm:$0xff]
          %v300 = vsel %vm290, 1, 0
          %v301 = vlaneseq
          %v302 = vshrl.u32 %v301, 7
          %v303 = vsub.s32 0, %v302
          %v304 = vrot.slane %v300, %v303
          %vm305 = vcmp.eq.s32.totalorder %v304, 1
          %v306 = vsel %vm305, %v299, 0.0
          %s307 = scalar_lea.vmem %s276, %s297
          %v308 = vld [vmem:[%s307] sm:$0xff]
          %309 = vrot.lane.b32.xlu0 %v306, 2
          %v310 = vpop.permute.xlu0 %309
          %v311 = vsel %vm287, 1, 0
          %vm312 = vcmp.eq.s32.totalorder %v311, 1
          %v313 = vsel %vm312, %v310, 0.0
          %315 = vset.pattern.permute.xlu0 0
          %316 = vperm.xlu0 %315, %v308
          %v317 = vpop.permute.xlu0 %316
          %v319 = vmul.f32 %v317, %v313
          %320 = vrot.lane.b32.xlu0 %v306, 1
          %v321 = vpop.permute.xlu0 %320
          %v322 = vsel %vm288, 1, 0
          %vm323 = vcmp.eq.s32.totalorder %v322, 1
          %v324 = vsel %vm323, %v321, 0.0
          %325 = vset.pattern.permute.xlu0 1
          %326 = vperm.xlu0 %325, %v308
          %v327 = vpop.permute.xlu0 %326
          %v329 = vmul.f32 %v327, %v324
          %v330 = vadd.f32 %v319, %v329
          %331 = vset.pattern.permute.xlu0 2
          %332 = vperm.xlu0 %331, %v308
          %v333 = vpop.permute.xlu0 %332
          %v335 = vmul.f32 %v333, %v306
          %v336 = vadd.f32 %v330, %v335
          %s337 = scalar_lea.vmem %s282, %s297
          %v338 = vld [vmem:[%s337] sm:$0xff]
          %340 = vset.pattern.permute.xlu0 0
          %341 = vperm.xlu0 %340, %v338
          %v342 = vpop.permute.xlu0 %341
          %v344 = vadd.f32 %v336, %v342
          %v345 = vsel %vm305, %v344, 0.0
          %s346 = scalar_lea.vmem %s258, %s297 [#allocation2]
          %347 = vst [vmem:[%s346] sm:$0xff] %v345
        $region41: #{tpu_custom_call.1} parent=35 // loop_footer
          %s296 = sadd.s32 1, %s292
        $region42: #{tpu_custom_call.1} parent=35 // loop_footer_branch
          %291 = sbr.rel target = $region38
        $region43: #{tpu_custom_call.1} parent=35 // loop_exit
          _
        %s348 = sand.u32 %s146, 1
        %s349 = scalar_lea.sflag [#allocation3], %s348
        %s350 = sand.u32 %s146, 1
        %s351 = smul.addr %s350, 16
        %s352 = scalar_lea.vmem [#allocation2], %s351
        // Predicated region
        $region44: #{tpu_custom_call.1} parent=35 // pred_check
          %p353 = pneg %p156
        $region45: #{tpu_custom_call.1} parent=35 // pred_check_branch
          %355 = sbr.rel (%p353) target = $region47
        $region46: #{tpu_custom_call.1} parent=35 // pred_region
          %s356 = smul.u32 2, %s22
          %s358 = ssub.s32 256, 256
          %359 = vsyncadd %s349, %s358
          %s360 = smul.addr %s23, 2
          %s361 = sadd.s32 %s356, %s360
          %s362 = smul.addr %s361, 128
          %s363 = scalar_lea.hbm %s4, %s362
          %s364 = sshll.u32 %s352, 4
          %s365 = int_to_ptr.vmem [resolvable:$true] %s364
          %370 = dma.vmem_to_hbm [thread:$0]  %s365, 256, %s363, %s349, 128, 128, 8
        $region47: #{tpu_custom_call.1} parent=35 // pred_fallthru
          _
      $region36: #{tpu_custom_call.1} parent=5 // pred_fallthru
        _
      %p371 = scmp.le.s32.totalorder 2, %s13
      // Predicated region
      $region48: #{tpu_custom_call.1} parent=5 // pred_check
        %p372 = pneg %p371
      $region49: #{tpu_custom_call.1} parent=5 // pred_check_branch
        %374 = sbr.rel (%p372) target = $region51
      $region50: #{tpu_custom_call.1} parent=5 // pred_region
        %s375 = ssub.s32 %s13, 2
        // Predicated region
        $region52: #{tpu_custom_call.1} parent=50 // pred_check
          %p376 = pneg %p162
        $region53: #{tpu_custom_call.1} parent=50 // pred_check_branch
          %378 = sbr.rel (%p376) target = $region55
        $region54: #{tpu_custom_call.1} parent=50 // pred_region
          %s379 = sand.u32 %s147, 1
          %s380 = scalar_lea.sflag [#allocation3], %s379
          %s381 = sand.u32 %s147, 1
          %s382 = smul.addr %s381, 16
          %s383 = scalar_lea.vmem [#allocation2], %s382
          %384 = dma.done %s380, 256
        $region55: #{tpu_custom_call.1} parent=50 // pred_fallthru
          _
      $region51: #{tpu_custom_call.1} parent=5 // pred_fallthru
        _
    $region6: #{tpu_custom_call.1} parent=1 // loop_footer
      %s17 = sadd.s32 1, %s13
    $region7: #{tpu_custom_call.1} parent=1 // loop_footer_branch
      %12 = sbr.rel target = $region3
    $region8: #{tpu_custom_call.1} parent=1 // loop_exit
      _
    %385 = vsyncpa [#allocation3], 1
    %s386 = scalar_lea.sflag [#allocation3], 1
    %387 = vsyncpa %s386, 1

</llo_original>
